<compile_context>
chip_gen: v7x
topology: tpu7x:2x2x1
jax: 0.10.0
libtpu: 0.0.40
codegen_flags: <defaults>
</compile_context>

<pallas_src>
import functools

import jax
import jax.numpy as jnp
from jax.experimental import pallas as pl
from jax.experimental.pallas import tpu as pltpu


def _round_up(a: int, b: int) -> int:
    return (a + b - 1) // b * b


def _vae_kernel(x_ref, w_ref, b_ref, eps_ref, z_ref, mu_ref, logvar_ref):
    x = x_ref[...]                                    # (tile_m, D), native dtype
    w = w_ref[...]                                    # (D, 2*L_pad), native dtype

    # Fused fc_mu | fc_var: one MXU matmul, f32 accumulation, f32 bias add.
    h = jnp.dot(x, w, preferred_element_type=jnp.float32) + b_ref[...]  # (tile_m, 2*L_pad)

    l_pad = h.shape[-1] // 2
    mu = h[:, :l_pad]                                 # lane-aligned view
    logvar = h[:, l_pad:]                             # lane-aligned view

    # reparameterize: z = eps * exp(0.5 * logvar) + mu   (exp -> EUP)
    std = jnp.exp(0.5 * logvar)
    eps = eps_ref[...].astype(jnp.float32)
    z = eps * std + mu

    # Direct whole-ref stores, no concatenate temp.
    z_ref[...] = z.astype(z_ref.dtype)
    mu_ref[...] = mu.astype(mu_ref.dtype)
    logvar_ref[...] = logvar.astype(logvar_ref.dtype)


@functools.partial(jax.jit, static_argnames=("tile_m_max", "vmem_budget_bytes"))
def vae_module(x, w_mu, b_mu, w_var, b_var, eps_key, *,
               tile_m_max: int = 1024,
               vmem_budget_bytes: int = 40 * 1024 * 1024):
    """x: (..., dim_input) -> dict(z, mu, logvar), each (..., dim_latent).

    w_mu / w_var: (dim_input, dim_latent)   (transposed nn.Linear weight)
    b_mu / b_var: (dim_latent,)
    """
    orig_shape = x.shape
    dim_input = orig_shape[-1]
    dim_latent = w_mu.shape[1]
    dtype = x.dtype
    itemsize = jnp.dtype(dtype).itemsize
    sublane = max(8, 32 // itemsize)          # 8 f32 / 16 bf16 / 32 int8

    x2d = x.reshape(-1, dim_input)
    m = x2d.shape[0]

    # --- Fuse the two Linear layers, padding each latent block to a lane multiple
    l_pad = _round_up(dim_latent, 128)

    def pad_w(w):
        return w if l_pad == dim_latent else jnp.pad(w, ((0, 0), (0, l_pad - dim_latent)))

    def pad_b(b):
        return b if l_pad == dim_latent else jnp.pad(b, (0, l_pad - dim_latent))

    w_packed = jnp.concatenate([pad_w(w_mu), pad_w(w_var)], axis=1).astype(dtype)   # (D, 2*L_pad)
    b_packed = jnp.concatenate([pad_b(b_mu), pad_b(b_var)], axis=0)
    b_packed = b_packed.reshape(1, 2 * l_pad).astype(jnp.float32)                    # (1, 2*L_pad)

    # --- Row tiling: >=4 grid steps when possible, sublane-aligned, VMEM-bounded.
    tile_m = min(tile_m_max, _round_up(pl.cdiv(m, 4), sublane))
    tile_m = min(max(tile_m, sublane), max(_round_up(m, sublane), sublane))

    def vmem_bytes(tm):
        x_b = 2 * tm * dim_input * itemsize            # double-buffered input tile
        eps_b = 2 * tm * l_pad * itemsize               # double-buffered eps tile
        out_b = 2 * 3 * tm * l_pad * itemsize           # three double-buffered outputs
        w_b = 2 * dim_input * 2 * l_pad * itemsize      # resident fused weight (2 bufs)
        b_b = 2 * 2 * l_pad * 4
        return x_b + eps_b + out_b + w_b + b_b

    while tile_m > sublane and vmem_bytes(tile_m) > vmem_budget_bytes:
        tile_m = max(_round_up(tile_m // 2, sublane), sublane)

    grid = (pl.cdiv(m, tile_m),)

    # Generation-aware VMEM request: actual bytes + headroom, never the full chip.
    vmem_limit = int(min(100 * 1024 * 1024, vmem_bytes(tile_m) + (8 << 20)))

    # Gaussian noise (torch.randn_like equivalent), generated once outside.
    eps = jax.random.normal(eps_key, (m, l_pad), dtype=dtype)

    z, mu, logvar = pl.pallas_call(
        _vae_kernel,
        out_shape=(
            jax.ShapeDtypeStruct((m, l_pad), dtype),
            jax.ShapeDtypeStruct((m, l_pad), dtype),
            jax.ShapeDtypeStruct((m, l_pad), dtype),
        ),
        grid_spec=pltpu.PrefetchScalarGridSpec(
            num_scalar_prefetch=0,
            grid=grid,
            in_specs=[
                # x rows: tiled + pipelined
                pl.BlockSpec((tile_m, dim_input), lambda i: (i, 0)),
                # fused weight / bias: constant index map -> resident, never re-fetched
                pl.BlockSpec((dim_input, 2 * l_pad), lambda i: (0, 0)),
                pl.BlockSpec((1, 2 * l_pad), lambda i: (0, 0)),
                # eps rows: tiled + pipelined
                pl.BlockSpec((tile_m, l_pad), lambda i: (i, 0)),
            ],
            out_specs=[
                pl.BlockSpec((tile_m, l_pad), lambda i: (i, 0)),
                pl.BlockSpec((tile_m, l_pad), lambda i: (i, 0)),
                pl.BlockSpec((tile_m, l_pad), lambda i: (i, 0)),
            ],
        ),
        compiler_params=pltpu.CompilerParams(
            dimension_semantics=("parallel",),
            vmem_limit_bytes=vmem_limit,
        ),
    )(x2d, w_packed, b_packed, eps)

    if l_pad != dim_latent:
        z = z[:, :dim_latent]
        mu = mu[:, :dim_latent]
        logvar = logvar[:, :dim_latent]

    out_dims = orig_shape[:-1] + (dim_latent,)
    return {
        "z": z.reshape(out_dims),
        "mu": mu.reshape(out_dims),
        "logvar": logvar.reshape(out_dims),
    }


def init_params(key, dim_input, dim_latent):
    """Deterministic init mimicking nn.Linear (uniform +-1/sqrt(fan_in))."""
    k1, k2, k3, k4 = jax.random.split(key, 4)
    bound = 1.0 / (dim_input ** 0.5)
    w_mu = jax.random.uniform(k1, (dim_input, dim_latent), jnp.float32, -bound, bound)
    b_mu = jax.random.uniform(k2, (dim_latent,), jnp.float32, -bound, bound)
    w_var = jax.random.uniform(k3, (dim_input, dim_latent), jnp.float32, -bound, bound)
    b_var = jax.random.uniform(k4, (dim_latent,), jnp.float32, -bound, bound)
    return w_mu, b_mu, w_var, b_var


if __name__ == "__main__":
    key = jax.random.PRNGKey(0)
    k_x, k_p, k_eps = jax.random.split(key, 3)

    batch, seq, dim_input, dim_latent = 2, 8, 32, 16
    x = jax.random.normal(k_x, (batch, seq, dim_input), dtype=jnp.float32)
    w_mu, b_mu, w_var, b_var = init_params(k_p, dim_input, dim_latent)

    out = vae_module(x, w_mu, b_mu, w_var, b_var, k_eps)
    jax.block_until_ready(out)

    # Pure-JAX reference (same eps the kernel consumed).
    l_pad = _round_up(dim_latent, 128)
    m = batch * seq
    eps_full = jax.random.normal(k_eps, (m, l_pad), dtype=x.dtype)
    eps_ref = eps_full[:, :dim_latent].reshape(batch, seq, dim_latent)

    mu_ref = x @ w_mu + b_mu
    logvar_ref = x @ w_var + b_var
    z_ref = eps_ref * jnp.exp(0.5 * logvar_ref) + mu_ref

    assert out["mu"].shape == (batch, seq, dim_latent)
    assert out["logvar"].shape == (batch, seq, dim_latent)
    assert out["z"].shape == (batch, seq, dim_latent)
    assert jnp.allclose(out["mu"], mu_ref, atol=2e-3, rtol=2e-3)
    assert jnp.allclose(out["logvar"], logvar_ref, atol=2e-3, rtol=2e-3)
    assert jnp.allclose(out["z"], z_ref, atol=2e-3, rtol=2e-3)
    assert bool(jnp.all(jnp.isfinite(out["z"])))

    print("KERNEL_OK")
</pallas_src>

<mosaic_0001>
module attributes {stable_mosaic.version = 11 : i64} {
  func.func @_vae_kernel(%arg0: i32, %arg1: memref<8x32xf32, #tpu.memory_space<vmem>>, %arg2: memref<32x256xf32, #tpu.memory_space<vmem>>, %arg3: memref<1x256xf32, #tpu.memory_space<vmem>>, %arg4: memref<8x128xf32, #tpu.memory_space<vmem>>, %arg5: memref<8x128xf32, #tpu.memory_space<vmem>>, %arg6: memref<8x128xf32, #tpu.memory_space<vmem>>, %arg7: memref<8x128xf32, #tpu.memory_space<vmem>>) attributes {dimension_semantics = [#tpu.dimension_semantics<parallel>], iteration_bounds = array<i64: 2>, scalar_prefetch = 0 : i64, scratch_operands = 0 : i64, tpu.core_type = #tpu.core_type<tc>, window_params = [{transform_indices = @transform_0, window_bounds = array<i64: 8, 32>}, {pipeline_mode = #tpu.pipeline_mode<synchronous>, transform_indices = @transform_1, window_bounds = array<i64: 32, 256>}, {pipeline_mode = #tpu.pipeline_mode<synchronous>, transform_indices = @transform_2, window_bounds = array<i64: 1, 256>}, {transform_indices = @transform_3, window_bounds = array<i64: 8, 128>}, {transform_indices = @transform_4, window_bounds = array<i64: 8, 128>}, {transform_indices = @transform_5, window_bounds = array<i64: 8, 128>}, {transform_indices = @transform_6, window_bounds = array<i64: 8, 128>}]} {
    %c0 = arith.constant 0 : index
    %c0_0 = arith.constant 0 : index
    %0 = vector.load %arg1[%c0, %c0_0] : memref<8x32xf32, #tpu.memory_space<vmem>>, vector<8x32xf32>
    %c0_1 = arith.constant 0 : index
    %c0_2 = arith.constant 0 : index
    %1 = vector.load %arg2[%c0_1, %c0_2] : memref<32x256xf32, #tpu.memory_space<vmem>>, vector<32x256xf32>
    %cst = arith.constant dense<0.000000e+00> : vector<8x256xf32>
    %2 = tpu.matmul %0, %1, %cst {dimension_numbers = #tpu.dot_dimension_numbers<[1], [0], [0], [1], [0, 0, 1, 1], [], []>} : vector<8x32xf32>, vector<32x256xf32>, vector<8x256xf32> -> vector<8x256xf32>
    %c0_3 = arith.constant 0 : index
    %c0_4 = arith.constant 0 : index
    %3 = vector.load %arg3[%c0_3, %c0_4] : memref<1x256xf32, #tpu.memory_space<vmem>>, vector<1x256xf32>
    %4 = vector.broadcast %3 : vector<1x256xf32> to vector<8x256xf32>
    %5 = arith.addf %2, %4 : vector<8x256xf32>
    %6 = vector.extract_strided_slice %5 {offsets = [0, 0], sizes = [8, 128], strides = [1, 1]} : vector<8x256xf32> to vector<8x128xf32>
    %7 = vector.extract_strided_slice %5 {offsets = [0, 128], sizes = [8, 128], strides = [1, 1]} : vector<8x256xf32> to vector<8x128xf32>
    %cst_5 = arith.constant 5.000000e-01 : f32
    %8 = vector.broadcast %cst_5 : f32 to vector<8x128xf32>
    %9 = arith.mulf %8, %7 : vector<8x128xf32>
    %10 = math.exp %9 : vector<8x128xf32>
    %c0_6 = arith.constant 0 : index
    %c0_7 = arith.constant 0 : index
    %11 = vector.load %arg4[%c0_6, %c0_7] : memref<8x128xf32, #tpu.memory_space<vmem>>, vector<8x128xf32>
    %12 = arith.mulf %11, %10 : vector<8x128xf32>
    %13 = arith.addf %12, %6 : vector<8x128xf32>
    %c0_8 = arith.constant 0 : index
    %c0_9 = arith.constant 0 : index
    %14 = vector.load %arg5[%c0_8, %c0_9] : memref<8x128xf32, #tpu.memory_space<vmem>>, vector<8x128xf32>
    tpu.vector_store %arg5[%c0_8, %c0_9], %13 {strides = array<i32>} : memref<8x128xf32, #tpu.memory_space<vmem>>, vector<8x128xf32>,
    %c0_10 = arith.constant 0 : index
    %c0_11 = arith.constant 0 : index
    %15 = vector.load %arg6[%c0_10, %c0_11] : memref<8x128xf32, #tpu.memory_space<vmem>>, vector<8x128xf32>
    tpu.vector_store %arg6[%c0_10, %c0_11], %6 {strides = array<i32>} : memref<8x128xf32, #tpu.memory_space<vmem>>, vector<8x128xf32>,
    %c0_12 = arith.constant 0 : index
    %c0_13 = arith.constant 0 : index
    %16 = vector.load %arg7[%c0_12, %c0_13] : memref<8x128xf32, #tpu.memory_space<vmem>>, vector<8x128xf32>
    tpu.vector_store %arg7[%c0_12, %c0_13], %7 {strides = array<i32>} : memref<8x128xf32, #tpu.memory_space<vmem>>, vector<8x128xf32>,
    return
  }
  func.func @transform_0(%arg0: i32) -> (i32, i32) {
    %c0_i32 = arith.constant 0 : i32
    %c0_i32_0 = arith.constant 0 : i32
    return %arg0, %c0_i32 : i32, i32
  }
  func.func @transform_1(%arg0: i32) -> (i32, i32) {
    %c0_i32 = arith.constant 0 : i32
    %c0_i32_0 = arith.constant 0 : i32
    %c0_i32_1 = arith.constant 0 : i32
    return %c0_i32, %c0_i32_0 : i32, i32
  }
  func.func @transform_2(%arg0: i32) -> (i32, i32) {
    %c0_i32 = arith.constant 0 : i32
    %c0_i32_0 = arith.constant 0 : i32
    %c0_i32_1 = arith.constant 0 : i32
    return %c0_i32, %c0_i32_0 : i32, i32
  }
  func.func @transform_3(%arg0: i32) -> (i32, i32) {
    %c0_i32 = arith.constant 0 : i32
    %c0_i32_0 = arith.constant 0 : i32
    return %arg0, %c0_i32 : i32, i32
  }
  func.func @transform_4(%arg0: i32) -> (i32, i32) {
    %c0_i32 = arith.constant 0 : i32
    %c0_i32_0 = arith.constant 0 : i32
    return %arg0, %c0_i32 : i32, i32
  }
  func.func @transform_5(%arg0: i32) -> (i32, i32) {
    %c0_i32 = arith.constant 0 : i32
    %c0_i32_0 = arith.constant 0 : i32
    return %arg0, %c0_i32 : i32, i32
  }
  func.func @transform_6(%arg0: i32) -> (i32, i32) {
    %c0_i32 = arith.constant 0 : i32
    %c0_i32_0 = arith.constant 0 : i32
    return %arg0, %c0_i32 : i32, i32
  }
}

</mosaic_0001>

<llo_original>
// kernel: vae_module.1
$region0: #{vae_module.1}
  #allocation0 [shape = 'u32[]', space=smem, size = 0x4, offset = 0x4, fixed_abs, tag = 'smem constant byte address 0x4 - core index']
  #allocation1 [shape = 'u32[144,128]{1,0:T(1,128)}', space=vmem, size = 0x12000, scoped, tag = 'internal scratch']
  %s0 = inlined_call_operand.vmem [shape: f32[16,32], index: 0, kind: input, shape index: {}]
  %s1 = inlined_call_operand.vmem [shape: f32[32,256], index: 1, kind: input, shape index: {}]
  %s2 = inlined_call_operand.vmem [shape: f32[1,256], index: 2, kind: input, shape index: {}]
  %s3 = inlined_call_operand.vmem [shape: f32[16,128], index: 3, kind: input, shape index: {}]
  %s4 = inlined_call_operand.vmem [shape: f32[16,128], index: 4, kind: output, shape index: {0}]
  %s5 = inlined_call_operand.vmem [shape: f32[16,128], index: 5, kind: output, shape index: {1}]
  %s6 = inlined_call_operand.vmem [shape: f32[16,128], index: 6, kind: output, shape index: {2}]
  %7 = xla_tuple %s4, %s5, %s6
  %s8 = sld [smem:[#allocation0]]
  $region65: #{vae_module.1} parent=0
    _
  %s10 = ssub.s32 1, %s8
  %s11 = scalar_select 0, %s10, %s8
  loop: start=0, step=1, limit=4
  $region2: #{vae_module.1} parent=0 // loop_pre_header
    _
  $region3: #{vae_module.1} parent=0 // loop_header
    %s13 = sphi 0, %s17
    %p14 = scmp.ge.s32.totalorder %s13, 4
    %s23 = sphi 0, %s25
    %s26 = sphi 0, %s23
    %s27 = sphi 0, %s26
    %s43 = sphi 0, %s27
    %s47 = sphi 0, %s47
    %s49 = sphi 0, %s47
    %s50 = sphi 0, %s49
    %s64 = sphi 0, %s50
    %s68 = sphi 0, %s68
    %s70 = sphi 0, %s68
    %s71 = sphi 0, %s70
    %s85 = sphi 0, %s71
    %s91 = sphi 0, %s93
    %s94 = sphi 0, %s91
    %s95 = sphi 0, %s94
    %s111 = sphi 0, %s95
    %s117 = sphi 0, %s119
    %s120 = sphi 0, %s117
    %s121 = sphi 0, %s120
    %s137 = sphi 0, %s121
    %s143 = sphi 0, %s145
    %s146 = sphi 0, %s143
    %s147 = sphi 0, %s146
    %s163 = sphi 0, %s147
    %s169 = sphi 0, %s171
    %s172 = sphi 0, %s169
    %s173 = sphi 0, %s172
    %s189 = sphi 0, %s173
  $region4: #{vae_module.1} parent=0 // loop_header_branch
    %16 = sbr.rel (%p14) target = $region8
  $region5: #{vae_module.1} parent=0 // loop_body
    %s18 = ssub.s32 %s13, 1
    %s19 = ssub.s32 %s13, 2
    %s20 = sadd.s32 %s13, 1
    %s21 = ssub.s32 %s13, %s20
    %p22 = scmp.eq.s32.totalorder %s21, 0
    %s24 = sadd.s32 %s23, 1
    %s25 = scalar_select %p22, %s23, %s24
    %p28 = pneg %p22
    %p29 = scmp.eq.s32.totalorder %s13, 1
    %p30 = por %p28, %p29
    %p31 = scmp.ne.s32.totalorder %s23, %s26
    %p32 = scmp.eq.s32.totalorder %s13, 0
    %p33 = por %p31, %p32
    %p34 = scmp.ne.s32.totalorder %s23, %s26
    %p35 = scmp.eq.s32.totalorder %s18, 1
    %p36 = por %p34, %p35
    %p37 = scmp.ne.s32.totalorder %s26, %s27
    %p38 = scmp.eq.s32.totalorder %s18, 0
    %p39 = por %p37, %p38
    %p40 = scmp.ne.s32.totalorder %s26, %s27
    %p41 = scmp.eq.s32.totalorder %s19, 1
    %p42 = por %p40, %p41
    %p44 = scmp.ne.s32.totalorder %s27, %s43
    %p45 = scmp.eq.s32.totalorder %s19, 0
    %p46 = por %p44, %p45
    %s48 = sadd.s32 %s47, 1
    %p51 = scmp.eq.s32.totalorder %s13, 1
    %p52 = scmp.ne.s32.totalorder %s47, %s49
    %p53 = scmp.eq.s32.totalorder %s13, 0
    %p54 = por %p52, %p53
    %p55 = scmp.ne.s32.totalorder %s47, %s49
    %p56 = scmp.eq.s32.totalorder %s18, 1
    %p57 = por %p55, %p56
    %p58 = scmp.ne.s32.totalorder %s49, %s50
    %p59 = scmp.eq.s32.totalorder %s18, 0
    %p60 = por %p58, %p59
    %p61 = scmp.ne.s32.totalorder %s49, %s50
    %p62 = scmp.eq.s32.totalorder %s19, 1
    %p63 = por %p61, %p62
    %p65 = scmp.ne.s32.totalorder %s50, %s64
    %p66 = scmp.eq.s32.totalorder %s19, 0
    %p67 = por %p65, %p66
    %s69 = sadd.s32 %s68, 1
    %p72 = scmp.eq.s32.totalorder %s13, 1
    %p73 = scmp.ne.s32.totalorder %s68, %s70
    %p74 = scmp.eq.s32.totalorder %s13, 0
    %p75 = por %p73, %p74
    %p76 = scmp.ne.s32.totalorder %s68, %s70
    %p77 = scmp.eq.s32.totalorder %s18, 1
    %p78 = por %p76, %p77
    %p79 = scmp.ne.s32.totalorder %s70, %s71
    %p80 = scmp.eq.s32.totalorder %s18, 0
    %p81 = por %p79, %p80
    %p82 = scmp.ne.s32.totalorder %s70, %s71
    %p83 = scmp.eq.s32.totalorder %s19, 1
    %p84 = por %p82, %p83
    %p86 = scmp.ne.s32.totalorder %s71, %s85
    %p87 = scmp.eq.s32.totalorder %s19, 0
    %p88 = por %p86, %p87
    %s89 = ssub.s32 %s13, %s20
    %p90 = scmp.eq.s32.totalorder %s89, 0
    %s92 = sadd.s32 %s91, 1
    %s93 = scalar_select %p90, %s91, %s92
    %p96 = pneg %p90
    %p97 = scmp.eq.s32.totalorder %s13, 1
    %p98 = por %p96, %p97
    %p99 = scmp.ne.s32.totalorder %s91, %s94
    %p100 = scmp.eq.s32.totalorder %s13, 0
    %p101 = por %p99, %p100
    %p102 = scmp.ne.s32.totalorder %s91, %s94
    %p103 = scmp.eq.s32.totalorder %s18, 1
    %p104 = por %p102, %p103
    %p105 = scmp.ne.s32.totalorder %s94, %s95
    %p106 = scmp.eq.s32.totalorder %s18, 0
    %p107 = por %p105, %p106
    %p108 = scmp.ne.s32.totalorder %s94, %s95
    %p109 = scmp.eq.s32.totalorder %s19, 1
    %p110 = por %p108, %p109
    %p112 = scmp.ne.s32.totalorder %s95, %s111
    %p113 = scmp.eq.s32.totalorder %s19, 0
    %p114 = por %p112, %p113
    %s115 = ssub.s32 %s13, %s20
    %p116 = scmp.eq.s32.totalorder %s115, 0
    %s118 = sadd.s32 %s117, 1
    %s119 = scalar_select %p116, %s117, %s118
    %p122 = pneg %p116
    %p123 = scmp.eq.s32.totalorder %s13, 1
    %p124 = por %p122, %p123
    %p125 = scmp.ne.s32.totalorder %s117, %s120
    %p126 = scmp.eq.s32.totalorder %s13, 0
    %p127 = por %p125, %p126
    %p128 = scmp.ne.s32.totalorder %s117, %s120
    %p129 = scmp.eq.s32.totalorder %s18, 1
    %p130 = por %p128, %p129
    %p131 = scmp.ne.s32.totalorder %s120, %s121
    %p132 = scmp.eq.s32.totalorder %s18, 0
    %p133 = por %p131, %p132
    %p134 = scmp.ne.s32.totalorder %s120, %s121
    %p135 = scmp.eq.s32.totalorder %s19, 1
    %p136 = por %p134, %p135
    %p138 = scmp.ne.s32.totalorder %s121, %s137
    %p139 = scmp.eq.s32.totalorder %s19, 0
    %p140 = por %p138, %p139
    %s141 = ssub.s32 %s13, %s20
    %p142 = scmp.eq.s32.totalorder %s141, 0
    %s144 = sadd.s32 %s143, 1
    %s145 = scalar_select %p142, %s143, %s144
    %p148 = pneg %p142
    %p149 = scmp.eq.s32.totalorder %s13, 1
    %p150 = por %p148, %p149
    %p151 = scmp.ne.s32.totalorder %s143, %s146
    %p152 = scmp.eq.s32.totalorder %s13, 0
    %p153 = por %p151, %p152
    %p154 = scmp.ne.s32.totalorder %s143, %s146
    %p155 = scmp.eq.s32.totalorder %s18, 1
    %p156 = por %p154, %p155
    %p157 = scmp.ne.s32.totalorder %s146, %s147
    %p158 = scmp.eq.s32.totalorder %s18, 0
    %p159 = por %p157, %p158
    %p160 = scmp.ne.s32.totalorder %s146, %s147
    %p161 = scmp.eq.s32.totalorder %s19, 1
    %p162 = por %p160, %p161
    %p164 = scmp.ne.s32.totalorder %s147, %s163
    %p165 = scmp.eq.s32.totalorder %s19, 0
    %p166 = por %p164, %p165
    %s167 = ssub.s32 %s13, %s20
    %p168 = scmp.eq.s32.totalorder %s167, 0
    %s170 = sadd.s32 %s169, 1
    %s171 = scalar_select %p168, %s169, %s170
    %p174 = pneg %p168
    %p175 = scmp.eq.s32.totalorder %s13, 1
    %p176 = por %p174, %p175
    %p177 = scmp.ne.s32.totalorder %s169, %s172
    %p178 = scmp.eq.s32.totalorder %s13, 0
    %p179 = por %p177, %p178
    %p180 = scmp.ne.s32.totalorder %s169, %s172
    %p181 = scmp.eq.s32.totalorder %s18, 1
    %p182 = por %p180, %p181
    %p183 = scmp.ne.s32.totalorder %s172, %s173
    %p184 = scmp.eq.s32.totalorder %s18, 0
    %p185 = por %p183, %p184
    %p186 = scmp.ne.s32.totalorder %s172, %s173
    %p187 = scmp.eq.s32.totalorder %s19, 1
    %p188 = por %p186, %p187
    %p190 = scmp.ne.s32.totalorder %s173, %s189
    %p191 = scmp.eq.s32.totalorder %s19, 0
    %p192 = por %p190, %p191
    %p193 = scmp.le.s32.totalorder 1, %s13
    %p194 = scmp.lt.s32.totalorder %s13, 3
    %p195 = pnand %p193, %p194
    %p196 = pneg %p195
    // Predicated region
    $region9: #{vae_module.1} parent=5 // pred_check
      _
    $region10: #{vae_module.1} parent=5 // pred_check_branch
      %198 = sbr.rel (%p195) target = $region12
    $region11: #{vae_module.1} parent=5 // pred_region
      %s199 = ssub.s32 %s13, 1
      // Predicated region
      $region13: #{vae_module.1} parent=11 // pred_check
        %p200 = pneg %p60
      $region14: #{vae_module.1} parent=11 // pred_check_branch
        %202 = sbr.rel (%p200) target = $region16
      $region15: #{vae_module.1} parent=11 // pred_region
        _
      $region16: #{vae_module.1} parent=11 // pred_fallthru
        _
      // Predicated region
      $region17: #{vae_module.1} parent=11 // pred_check
        %p203 = pneg %p81
      $region18: #{vae_module.1} parent=11 // pred_check_branch
        %205 = sbr.rel (%p203) target = $region20
      $region19: #{vae_module.1} parent=11 // pred_region
        _
      $region20: #{vae_module.1} parent=11 // pred_fallthru
        _
    $region12: #{vae_module.1} parent=5 // pred_fallthru
      _
    %p206 = scmp.lt.s32.totalorder %s13, 2
    // Predicated region
    $region21: #{vae_module.1} parent=5 // pred_check
      %p207 = pneg %p206
    $region22: #{vae_module.1} parent=5 // pred_check_branch
      %209 = sbr.rel (%p207) target = $region24
    $region23: #{vae_module.1} parent=5 // pred_region
      // Predicated region
      $region25: #{vae_module.1} parent=23 // pred_check
        %p210 = pneg %p33
      $region26: #{vae_module.1} parent=23 // pred_check_branch
        %212 = sbr.rel (%p210) target = $region28
      $region27: #{vae_module.1} parent=23 // pred_region
        %p213 = scmp.lt.s32.totalorder %s13, 1
        %s214 = scalar_select %p213, %s13, 1
        %s215 = smul.addr %s214, 8
        %s216 = scalar_lea.vmem %s0, %s215
      $region28: #{vae_module.1} parent=23 // pred_fallthru
        _
      // Predicated region
      $region29: #{vae_module.1} parent=23 // pred_check
        %p217 = pneg %p101
      $region30: #{vae_module.1} parent=23 // pred_check_branch
        %219 = sbr.rel (%p217) target = $region32
      $region31: #{vae_module.1} parent=23 // pred_region
        %p220 = scmp.lt.s32.totalorder %s13, 1
        %s221 = scalar_select %p220, %s13, 1
        %s222 = smul.addr %s221, 8
        %s223 = scalar_lea.vmem %s3, %s222
      $region32: #{vae_module.1} parent=23 // pred_fallthru
        _
    $region24: #{vae_module.1} parent=5 // pred_fallthru
      _
    %p224 = scmp.le.s32.totalorder 1, %s13
    %p225 = scmp.lt.s32.totalorder %s13, 3
    %p226 = pnand %p224, %p225
    %p227 = pneg %p226
    // Predicated region
    $region33: #{vae_module.1} parent=5 // pred_check
      _
    $region34: #{vae_module.1} parent=5 // pred_check_branch
      %229 = sbr.rel (%p226) target = $region36
    $region35: #{vae_module.1} parent=5 // pred_region
      %s230 = ssub.s32 %s13, 1
      %p231 = scmp.lt.s32.totalorder %s18, 1
      %s232 = scalar_select %p231, %s18, 1
      %s233 = smul.addr %s232, 8
      %s234 = scalar_lea.vmem %s0, %s233
      %p235 = pneg %p39
      %p236 = pneg %p36
      %p237 = pneg %p60
      %p238 = pneg %p57
      %p239 = pneg %p81
      %p240 = pneg %p78
      %p241 = scmp.lt.s32.totalorder %s18, 1
      %s242 = scalar_select %p241, %s18, 1
      %s243 = smul.addr %s242, 8
      %s244 = scalar_lea.vmem %s3, %s243
      %p245 = pneg %p107
      %p246 = pneg %p104
      %p247 = pneg %p133
      %p248 = pneg %p130
      %p249 = scmp.lt.s32.totalorder %s18, 1
      %s250 = scalar_select %p249, %s18, 1
      %s251 = smul.addr %s250, 8
      %s252 = scalar_lea.vmem %s4, %s251
      %p253 = pneg %p159
      %p254 = pneg %p156
      %p255 = scmp.lt.s32.totalorder %s18, 1
      %s256 = scalar_select %p255, %s18, 1
      %s257 = smul.addr %s256, 8
      %s258 = scalar_lea.vmem %s5, %s257
      %p259 = pneg %p185
      %p260 = pneg %p182
      %p261 = scmp.lt.s32.totalorder %s18, 1
      %s262 = scalar_select %p261, %s18, 1
      %s263 = smul.addr %s262, 8
      %s264 = scalar_lea.vmem %s6, %s263
      %p265 = scmp.lt.s32.totalorder %s18, 1
      %s266 = scalar_select %p265, %s18, 1
      %s267 = smul.addr %s266, 8
      %s268 = scalar_lea.vmem %s0, %s267
      %p269 = scmp.lt.s32.totalorder %s18, 1
      %s270 = scalar_select %p269, %s18, 1
      %s271 = smul.addr %s270, 8
      %s272 = scalar_lea.vmem %s3, %s271
      %p273 = scmp.lt.s32.totalorder %s18, 1
      %s274 = scalar_select %p273, %s18, 1
      %s275 = smul.addr %s274, 8
      %s276 = scalar_lea.vmem %s4, %s275
      %p277 = scmp.lt.s32.totalorder %s18, 1
      %s278 = scalar_select %p277, %s18, 1
      %s279 = smul.addr %s278, 8
      %s280 = scalar_lea.vmem %s5, %s279
      %p281 = scmp.lt.s32.totalorder %s18, 1
      %s282 = scalar_select %p281, %s18, 1
      %s283 = smul.addr %s282, 8
      %s284 = scalar_lea.vmem %s6, %s283
      %v285 = vld [vmem:[%s268] sm:$0xff]
      %v286 = vld [vmem:[%s1] sm:$0xff]
      %v287 = vld [vmem:[%s1 + $0x8] sm:$0xff]
      %v288 = vld [vmem:[%s1 + $0x10] sm:$0xff]
      %v289 = vld [vmem:[%s1 + $0x18] sm:$0xff]
      %v290 = vld [vmem:[%s1 + $0x20] sm:$0xff]
      %v291 = vld [vmem:[%s1 + $0x28] sm:$0xff]
      %v292 = vld [vmem:[%s1 + $0x30] sm:$0xff]
      %v293 = vld [vmem:[%s1 + $0x38] sm:$0xff]
      %v294 = vld [vmem:[%s2] sm:$0x3]
      %v296 = vlaneseq
      %v297 = vshrl.u32 %v296, 7
      %v298 = vsub.s32 0, %v297
      %v299 = vrot.slane %v294, %v298
      %v300 = vlaneseq
      %v301 = vshrl.u32 %v300, 7
      %v302 = vsub.s32 1, %v301
      %v303 = vrot.slane %v294, %v302
      %vm306 = vcmask 261120
      %v308 = vsel %vm306, %v285, 0
      %310 = vmatprep.subr.mxu0 %v287
      %311 = vmatpush1.msra.mxu0 %v286
      %312 = vmatprep.subr.mxu0 %v289
      %313 = vmatpush1.msra.mxu0 %v288
      %314 = vmatprep.subr.mxu0 %v291
      %315 = vmatpush1.msra.mxu0 %v290
      %316 = vmatprep.subr.mxu0 %v293
      %317 = vmatpush1.msra.mxu0 %v292
      %318 = vmatprep.subr.mxu0 0.0
      %319 = vmatpush1.msra.mxu0 0.0
      %320 = vmatprep.subr.mxu0 0.0
      %321 = vmatpush1.msra.mxu0 0.0
      %322 = vmatprep.subr.mxu0 0.0
      %323 = vmatpush1.msra.mxu0 0.0
      %324 = vmatprep.subr.mxu0 0.0
      %325 = vmatpush1.msra.mxu0 0.0
      %326 = vmatprep.subr.mxu0 0.0
      %327 = vmatpush1.msra.mxu0 0.0
      %328 = vmatprep.subr.mxu0 0.0
      %329 = vmatpush1.msra.mxu0 0.0
      %330 = vmatprep.subr.mxu0 0.0
      %331 = vmatpush1.msra.mxu0 0.0
      %332 = vmatprep.subr.mxu0 0.0
      %333 = vmatpush1.msra.mxu0 0.0
      %334 = vmatprep.subr.mxu0 0.0
      %335 = vmatpush1.msra.mxu0 0.0
      %336 = vmatprep.subr.mxu0 0.0
      %337 = vmatpush1.msra.mxu0 0.0
      %338 = vmatprep.subr.mxu0 0.0
      %339 = vmatpush1.msra.mxu0 0.0
      %340 = vmatprep.subr.mxu0 0.0
      %341 = vmatpush1.msra.mxu0 0.0
      %342 = vmatprep.subr.mxu0 0.0
      %343 = vmatpush1.msra.mxu0 0.0
      %344 = vmatprep.subr.mxu0 0.0
      %345 = vmatpush1.msra.mxu0 0.0
      %346 = vmatprep.subr.mxu0 0.0
      %347 = vmatpush1.msra.mxu0 0.0
      %348 = vmatprep.subr.mxu0 0.0
      %349 = vmatpush1.msra.mxu0 0.0
      %350 = vmatprep.subr.mxu0 0.0
      %351 = vmatpush1.msra.mxu0 0.0
      %352 = vmatprep.subr.mxu0 0.0
      %353 = vmatpush1.msra.mxu0 0.0
      %354 = vmatprep.subr.mxu0 0.0
      %355 = vmatpush1.msra.mxu0 0.0
      %356 = vmatprep.subr.mxu0 0.0
      %357 = vmatpush1.msra.mxu0 0.0
      %358 = vmatprep.subr.mxu0 0.0
      %359 = vmatpush1.msra.mxu0 0.0
      %360 = vmatprep.subr.mxu0 0.0
      %361 = vmatpush1.msra.mxu0 0.0
      %362 = vmatprep.subr.mxu0 0.0
      %363 = vmatpush1.msra.mxu0 0.0
      %364 = vmatprep.subr.mxu0 0.0
      %365 = vmatpush1.msra.mxu0 0.0
      %366 = vmatprep.subr.mxu0 0.0
      %367 = vmatpush1.msra.mxu0 0.0
      %368 = vmatprep.subr.mxu0 0.0
      %369 = vmatpush1.msra.mxu0 0.0
      %370 = vmatprep.subr.mxu0 0.0
      %371 = vmatpush1.msra.mxu0 0.0
      %372 = vmatprep.subr.mxu0 0.0
      %373 = vmatpush1.msra.mxu0 0.0
      %374 = vmatprep.mubr.f32.mxu0 0.0
      %375 = vmatmul.mubr.f32.gmra.mrb[0].mxu0 %v308
      %v376 = vpop.f32.mrb[0].mxu0
      %v377 = vadd.f32 %v299, %v376
      %v378 = vpop.f32.mrb[0].mxu0
      %v379 = vadd.f32 %v303, %v378
      %380 = vdwg.mxu0
      %v381 = vmul.f32 %v379, 0.5
      %v382 = vmul.f32 %v381, 1.442695
      %v383 = vpow.pop %v382
      %v384 = vld [vmem:[%s272] sm:$0xff]
      %v385 = vmul.f32 %v384, %v383
      %v386 = vadd.f32 %v385, %v377
      %387 = vst [vmem:[%s276] sm:$0xff] %v386
      %388 = vst [vmem:[%s280] sm:$0xff] %v377
      %389 = vst [vmem:[%s284] sm:$0xff] %v379
      %p390 = scmp.lt.s32.totalorder %s18, 1
      %s391 = scalar_select %p390, %s18, 1
      %s392 = smul.addr %s391, 8
      %s393 = scalar_lea.vmem %s4, %s392
      %p394 = scmp.lt.s32.totalorder %s18, 1
      %s395 = scalar_select %p394, %s18, 1
      %s396 = smul.addr %s395, 8
      %s397 = scalar_lea.vmem %s5, %s396
      %p398 = scmp.lt.s32.totalorder %s18, 1
      %s399 = scalar_select %p398, %s18, 1
      %s400 = smul.addr %s399, 8
      %s401 = scalar_lea.vmem %s6, %s400
      // Predicated region
      $region37: #{vae_module.1} parent=35 // pred_check
        %p402 = pneg %p130
      $region38: #{vae_module.1} parent=35 // pred_check_branch
        %404 = sbr.rel (%p402) target = $region40
      $region39: #{vae_module.1} parent=35 // pred_region
        _
      $region40: #{vae_module.1} parent=35 // pred_fallthru
        _
      // Predicated region
      $region41: #{vae_module.1} parent=35 // pred_check
        %p405 = pneg %p156
      $region42: #{vae_module.1} parent=35 // pred_check_branch
        %407 = sbr.rel (%p405) target = $region44
      $region43: #{vae_module.1} parent=35 // pred_region
        _
      $region44: #{vae_module.1} parent=35 // pred_fallthru
        _
      // Predicated region
      $region45: #{vae_module.1} parent=35 // pred_check
        %p408 = pneg %p182
      $region46: #{vae_module.1} parent=35 // pred_check_branch
        %410 = sbr.rel (%p408) target = $region48
      $region47: #{vae_module.1} parent=35 // pred_region
        _
      $region48: #{vae_module.1} parent=35 // pred_fallthru
        _
    $region36: #{vae_module.1} parent=5 // pred_fallthru
      _
    %p411 = scmp.le.s32.totalorder 2, %s13
    // Predicated region
    $region49: #{vae_module.1} parent=5 // pred_check
      %p412 = pneg %p411
    $region50: #{vae_module.1} parent=5 // pred_check_branch
      %414 = sbr.rel (%p412) target = $region52
    $region51: #{vae_module.1} parent=5 // pred_region
      %s415 = ssub.s32 %s13, 2
      // Predicated region
      $region53: #{vae_module.1} parent=51 // pred_check
        %p416 = pneg %p136
      $region54: #{vae_module.1} parent=51 // pred_check_branch
        %418 = sbr.rel (%p416) target = $region56
      $region55: #{vae_module.1} parent=51 // pred_region
        %p419 = scmp.lt.s32.totalorder %s19, 1
        %s420 = scalar_select %p419, %s19, 1
        %s421 = smul.addr %s420, 8
        %s422 = scalar_lea.vmem %s4, %s421
      $region56: #{vae_module.1} parent=51 // pred_fallthru
        _
      // Predicated region
      $region57: #{vae_module.1} parent=51 // pred_check
        %p423 = pneg %p162
      $region58: #{vae_module.1} parent=51 // pred_check_branch
        %425 = sbr.rel (%p423) target = $region60
      $region59: #{vae_module.1} parent=51 // pred_region
        %p426 = scmp.lt.s32.totalorder %s19, 1
        %s427 = scalar_select %p426, %s19, 1
        %s428 = smul.addr %s427, 8
        %s429 = scalar_lea.vmem %s5, %s428
      $region60: #{vae_module.1} parent=51 // pred_fallthru
        _
      // Predicated region
      $region61: #{vae_module.1} parent=51 // pred_check
        %p430 = pneg %p188
      $region62: #{vae_module.1} parent=51 // pred_check_branch
        %432 = sbr.rel (%p430) target = $region64
      $region63: #{vae_module.1} parent=51 // pred_region
        %p433 = scmp.lt.s32.totalorder %s19, 1
        %s434 = scalar_select %p433, %s19, 1
        %s435 = smul.addr %s434, 8
        %s436 = scalar_lea.vmem %s6, %s435
      $region64: #{vae_module.1} parent=51 // pred_fallthru
        _
    $region52: #{vae_module.1} parent=5 // pred_fallthru
      _
  $region6: #{vae_module.1} parent=0 // loop_footer
    %s17 = sadd.s32 1, %s13
  $region7: #{vae_module.1} parent=0 // loop_footer_branch
    %12 = sbr.rel target = $region3
  $region8: #{vae_module.1} parent=0 // loop_exit
    _

</llo_original>
